<compile_context>
chip_gen: v7x
topology: tpu7x:2x2x1
jax: 0.10.0
libtpu: 0.0.40
codegen_flags: <defaults>
</compile_context>

<pallas_src>
import functools

import jax
import jax.numpy as jnp
from jax.experimental import pallas as pl
from jax.experimental.pallas import tpu as pltpu


# ----------------------------------------------------------------------------
# Fused residual-block kernel: one MXU dot for both branches + f32 epilogue
# ----------------------------------------------------------------------------
def _residual_block_kernel(p_ref, w_ref, b_ref, o_ref, *, cout):
    # p_ref: (tm, 9*Cin)      bf16 im2col patches
    # w_ref: (9*Cin, 2*Cout)  bf16; [:, :Cout] = conv3x3 (BN scale folded),
    #                               [:, Cout:] = shortcut (1x1 conv / identity
    #                               embedded into the center-tap rows)
    # b_ref: (1, 2*Cout)      f32 biases (left BN bias | shortcut BN bias or 0)
    # o_ref: (tm, Cout)       f32 block output
    acc = jnp.dot(p_ref[...], w_ref[...], preferred_element_type=jnp.float32)
    acc = acc + b_ref[...]
    left = jnp.maximum(acc[:, :cout], 0.0)     # ReLU(BN(conv3x3(x))); Dropout = id (eval)
    right = acc[:, cout:]                      # BN(conv1x1(x)) or identity(x)
    o_ref[...] = (left + right).astype(o_ref.dtype)


def _pick_row_tile(M):
    # Largest tile that keeps >=2 grid steps (feeds both v7x TensorCores and
    # amortizes the ~0.35us/step overhead); otherwise a single full block.
    for tm in (512, 256):
        if M % tm == 0 and M // tm >= 2:
            return tm
    return M


def residual_block_pallas(patches_bf16, w_comb, b_comb, cout):
    M, K = patches_bf16.shape
    tm = _pick_row_tile(M)
    grid = (M // tm,)
    kernel = functools.partial(_residual_block_kernel, cout=cout)
    return pl.pallas_call(
        kernel,
        out_shape=jax.ShapeDtypeStruct((M, cout), jnp.float32),
        grid_spec=pltpu.PrefetchScalarGridSpec(
            num_scalar_prefetch=0,
            grid=grid,
            in_specs=[
                pl.BlockSpec((tm, K), lambda i: (i, 0)),
                pl.BlockSpec((K, 2 * cout), lambda i: (0, 0)),
                pl.BlockSpec((1, 2 * cout), lambda i: (0, 0)),
            ],
            out_specs=pl.BlockSpec((tm, cout), lambda i: (i, 0)),
        ),
        compiler_params=pltpu.CompilerParams(
            dimension_semantics=("parallel",)),
    )(patches_bf16, w_comb, b_comb)


# ----------------------------------------------------------------------------
# Glue: im2col (bf16) and parameter folding
# ----------------------------------------------------------------------------
def extract_patches_3x3(x_nhwc, stride):
    """x: (N,H,W,C), kernel 3x3, pad 1 -> (N*Ho*Wo, 9*C) in (kh,kw,cin) order."""
    N, H, W, C = x_nhwc.shape
    Ho = (H - 1) // stride + 1
    Wo = (W - 1) // stride + 1
    xp = jnp.pad(x_nhwc, ((0, 0), (1, 1), (1, 1), (0, 0)))
    pieces = []
    for ki in range(3):
        for kj in range(3):
            pieces.append(xp[:,
                             ki:ki + stride * (Ho - 1) + 1:stride,
                             kj:kj + stride * (Wo - 1) + 1:stride, :])
    patches = jnp.concatenate(pieces, axis=-1)        # (N, Ho, Wo, 9*C)
    return patches.reshape(N * Ho * Wo, 9 * C), (N, Ho, Wo)


def _fold_bn(gamma, beta, mean, var, eps=1e-5):
    scale = gamma / jnp.sqrt(var + eps)
    bias = beta - mean * scale
    return scale, bias


def build_block_weights(p, inchannel, outchannel):
    """Fold BN into weights and build the column-concatenated (9*Cin, 2*Cout) RHS."""
    K = 9 * inchannel
    ctr = 4 * inchannel                               # rows of tap (kh=1, kw=1)

    # Left branch: conv3x3 (Cout,Cin,3,3) -> (9*Cin, Cout), BN scale folded in.
    scale_l, bias_l = _fold_bn(p['bn_gamma'], p['bn_beta'], p['bn_mean'], p['bn_var'])
    w_l = jnp.transpose(p['conv_w'], (2, 3, 1, 0)).reshape(K, outchannel)
    w_l = w_l * scale_l[None, :]

    # Shortcut branch embedded into the center-tap rows.
    w_r = jnp.zeros((K, outchannel), jnp.float32)
    if 'sc_w' in p:                                   # projection: 1x1 conv + BN
        scale_r, bias_r = _fold_bn(p['sc_gamma'], p['sc_beta'],
                                   p['sc_mean'], p['sc_var'])
        w_sc = jnp.transpose(p['sc_w'][:, :, 0, 0])   # (Cin, Cout)
        w_r = w_r.at[ctr:ctr + inchannel, :].set(w_sc * scale_r[None, :])
    else:                                             # identity shortcut
        w_r = w_r.at[ctr:ctr + inchannel, :].set(
            jnp.eye(inchannel, outchannel, dtype=jnp.float32))
        bias_r = jnp.zeros((outchannel,), jnp.float32)

    w_comb = jnp.concatenate([w_l, w_r], axis=1).astype(jnp.bfloat16)   # (K, 2*Cout)
    b_comb = jnp.concatenate([bias_l, bias_r])[None, :].astype(jnp.float32)
    return w_comb, b_comb


def residual_block_forward(x_nchw, w_comb, b_comb, *, stride, outchannel):
    """ResidualBlock.forward — accepts/returns PyTorch NCHW layout."""
    x = jnp.transpose(x_nchw, (0, 2, 3, 1)).astype(jnp.float32)   # NCHW -> NHWC
    patches, (N, Ho, Wo) = extract_patches_3x3(x, stride)
    out = residual_block_pallas(patches.astype(jnp.bfloat16), w_comb, b_comb,
                                outchannel)
    out = out.reshape(N, Ho, Wo, outchannel)
    return jnp.transpose(out, (0, 3, 1, 2))                       # back to NCHW


# ----------------------------------------------------------------------------
# Parameter construction (PyTorch-style raw params) + pure-JAX reference
# ----------------------------------------------------------------------------
def init_block_params(key, inchannel, outchannel, stride):
    ks = jax.random.split(key, 10)
    p = {
        'conv_w': 0.1 * jax.random.normal(ks[0], (outchannel, inchannel, 3, 3),
                                          jnp.float32),
        'bn_gamma': 1.0 + 0.1 * jax.random.normal(ks[1], (outchannel,), jnp.float32),
        'bn_beta': 0.1 * jax.random.normal(ks[2], (outchannel,), jnp.float32),
        'bn_mean': 0.1 * jax.random.normal(ks[3], (outchannel,), jnp.float32),
        'bn_var': jnp.abs(jax.random.normal(ks[4], (outchannel,), jnp.float32)) + 0.5,
    }
    if stride != 1 or inchannel != outchannel:
        p['sc_w'] = 0.1 * jax.random.normal(ks[5], (outchannel, inchannel, 1, 1),
                                            jnp.float32)
        p['sc_gamma'] = 1.0 + 0.1 * jax.random.normal(ks[6], (outchannel,), jnp.float32)
        p['sc_beta'] = 0.1 * jax.random.normal(ks[7], (outchannel,), jnp.float32)
        p['sc_mean'] = 0.1 * jax.random.normal(ks[8], (outchannel,), jnp.float32)
        p['sc_var'] = jnp.abs(jax.random.normal(ks[9], (outchannel,), jnp.float32)) + 0.5
    return p


def reference_forward(p, x_nchw, stride, eps=1e-5):
    x = x_nchw.astype(jnp.float32)
    out = jax.lax.conv_general_dilated(
        x, p['conv_w'], window_strides=(stride, stride),
        padding=((1, 1), (1, 1)), dimension_numbers=('NCHW', 'OIHW', 'NCHW'))
    s = p['bn_gamma'] / jnp.sqrt(p['bn_var'] + eps)
    b = p['bn_beta'] - p['bn_mean'] * s
    out = jnp.maximum(out * s[None, :, None, None] + b[None, :, None, None], 0.0)
    if 'sc_w' in p:
        sc = jax.lax.conv_general_dilated(
            x, p['sc_w'], window_strides=(stride, stride), padding='VALID',
            dimension_numbers=('NCHW', 'OIHW', 'NCHW'))
        s2 = p['sc_gamma'] / jnp.sqrt(p['sc_var'] + eps)
        b2 = p['sc_beta'] - p['sc_mean'] * s2
        sc = sc * s2[None, :, None, None] + b2[None, :, None, None]
    else:
        sc = x
    return out + sc


# ----------------------------------------------------------------------------
if __name__ == "__main__":
    key = jax.random.PRNGKey(0)
    kx, kA, kB = jax.random.split(key, 3)
    x = jax.random.normal(kx, (2, 16, 16, 16), jnp.float32)   # NCHW, like PyTorch

    # Case A: identity shortcut (stride=1, inchannel == outchannel == 16)
    pA = init_block_params(kA, 16, 16, 1)
    wA, bA = build_block_weights(pA, 16, 16)
    fwdA = jax.jit(functools.partial(residual_block_forward, stride=1, outchannel=16))
    outA = jax.block_until_ready(fwdA(x, wA, bA))
    refA = reference_forward(pA, x, 1)
    assert outA.shape == (2, 16, 16, 16), outA.shape
    assert bool(jnp.all(jnp.isfinite(outA)))
    assert bool(jnp.allclose(outA, refA, rtol=5e-2, atol=5e-2))

    # Case B: projection shortcut (stride=2, 16 -> 32 channels)
    pB = init_block_params(kB, 16, 32, 2)
    wB, bB = build_block_weights(pB, 16, 32)
    fwdB = jax.jit(functools.partial(residual_block_forward, stride=2, outchannel=32))
    outB = jax.block_until_ready(fwdB(x, wB, bB))
    refB = reference_forward(pB, x, 2)
    assert outB.shape == (2, 32, 8, 8), outB.shape
    assert bool(jnp.all(jnp.isfinite(outB)))
    assert bool(jnp.allclose(outB, refB, rtol=5e-2, atol=5e-2))

    print("KERNEL_OK")
</pallas_src>

<mosaic_0001>
module attributes {stable_mosaic.version = 11 : i64} {
  func.func @_residual_block_kernel(%arg0: i32, %arg1: memref<256x144xbf16, #tpu.memory_space<vmem>>, %arg2: memref<144x32xbf16, #tpu.memory_space<vmem>>, %arg3: memref<1x32xf32, #tpu.memory_space<vmem>>, %arg4: memref<256x16xf32, #tpu.memory_space<vmem>>) attributes {dimension_semantics = [#tpu.dimension_semantics<parallel>], iteration_bounds = array<i64: 2>, scalar_prefetch = 0 : i64, scratch_operands = 0 : i64, tpu.core_type = #tpu.core_type<tc>, window_params = [{transform_indices = @transform_0, window_bounds = array<i64: 256, 144>}, {pipeline_mode = #tpu.pipeline_mode<synchronous>, transform_indices = @transform_1, window_bounds = array<i64: 144, 32>}, {pipeline_mode = #tpu.pipeline_mode<synchronous>, transform_indices = @transform_2, window_bounds = array<i64: 1, 32>}, {transform_indices = @transform_3, window_bounds = array<i64: 256, 16>}]} {
    %c0 = arith.constant 0 : index
    %c0_0 = arith.constant 0 : index
    %0 = vector.load %arg1[%c0, %c0_0] : memref<256x144xbf16, #tpu.memory_space<vmem>>, vector<256x144xbf16>
    %c0_1 = arith.constant 0 : index
    %c0_2 = arith.constant 0 : index
    %1 = vector.load %arg2[%c0_1, %c0_2] : memref<144x32xbf16, #tpu.memory_space<vmem>>, vector<144x32xbf16>
    %cst = arith.constant dense<0.000000e+00> : vector<256x32xf32>
    %2 = tpu.matmul %0, %1, %cst {dimension_numbers = #tpu.dot_dimension_numbers<[1], [0], [0], [1], [0, 0, 1, 1], [], []>} : vector<256x144xbf16>, vector<144x32xbf16>, vector<256x32xf32> -> vector<256x32xf32>
    %c0_3 = arith.constant 0 : index
    %c0_4 = arith.constant 0 : index
    %3 = vector.load %arg3[%c0_3, %c0_4] : memref<1x32xf32, #tpu.memory_space<vmem>>, vector<1x32xf32>
    %4 = vector.broadcast %3 : vector<1x32xf32> to vector<256x32xf32>
    %5 = arith.addf %2, %4 : vector<256x32xf32>
    %6 = vector.extract_strided_slice %5 {offsets = [0, 0], sizes = [256, 16], strides = [1, 1]} : vector<256x32xf32> to vector<256x16xf32>
    %cst_5 = arith.constant 0.000000e+00 : f32
    %7 = vector.broadcast %cst_5 : f32 to vector<256x16xf32>
    %8 = arith.maximumf %6, %7 : vector<256x16xf32>
    %9 = vector.extract_strided_slice %5 {offsets = [0, 16], sizes = [256, 16], strides = [1, 1]} : vector<256x32xf32> to vector<256x16xf32>
    %10 = arith.addf %8, %9 : vector<256x16xf32>
    %c0_6 = arith.constant 0 : index
    %c0_7 = arith.constant 0 : index
    %11 = vector.load %arg4[%c0_6, %c0_7] : memref<256x16xf32, #tpu.memory_space<vmem>>, vector<256x16xf32>
    tpu.vector_store %arg4[%c0_6, %c0_7], %10 {strides = array<i32>} : memref<256x16xf32, #tpu.memory_space<vmem>>, vector<256x16xf32>,
    return
  }
  func.func @transform_0(%arg0: i32) -> (i32, i32) {
    %c0_i32 = arith.constant 0 : i32
    %c0_i32_0 = arith.constant 0 : i32
    return %arg0, %c0_i32 : i32, i32
  }
  func.func @transform_1(%arg0: i32) -> (i32, i32) {
    %c0_i32 = arith.constant 0 : i32
    %c0_i32_0 = arith.constant 0 : i32
    %c0_i32_1 = arith.constant 0 : i32
    return %c0_i32, %c0_i32_0 : i32, i32
  }
  func.func @transform_2(%arg0: i32) -> (i32, i32) {
    %c0_i32 = arith.constant 0 : i32
    %c0_i32_0 = arith.constant 0 : i32
    %c0_i32_1 = arith.constant 0 : i32
    return %c0_i32, %c0_i32_0 : i32, i32
  }
  func.func @transform_3(%arg0: i32) -> (i32, i32) {
    %c0_i32 = arith.constant 0 : i32
    %c0_i32_0 = arith.constant 0 : i32
    return %arg0, %c0_i32 : i32, i32
  }
}

</mosaic_0001>

<llo_original>
// kernel: residual_block_forward.1
$region0: #{residual_block_forward.1}
  #allocation0 [shape = 'u32[]', space=smem, size = 0x4, offset = 0x4, fixed_abs, tag = 'smem constant byte address 0x4 - core index']
  #allocation1 [shape = 'u32[144,128]{1,0:T(1,128)}', space=vmem, size = 0x12000, scoped, tag = 'internal scratch']
  %s0 = inlined_call_operand.vmem [shape: bf16[512,144], index: 0, kind: input, shape index: {}]
  %s1 = inlined_call_operand.vmem [shape: bf16[144,32], index: 1, kind: input, shape index: {}]
  %s2 = inlined_call_operand.vmem [shape: f32[1,32], index: 2, kind: input, shape index: {}]
  %s3 = inlined_call_operand.vmem [shape: f32[512,16], index: 3, kind: output, shape index: {}]
  %s4 = sld [smem:[#allocation0]]
  $region45: #{residual_block_forward.1} parent=0
    _
  %s6 = ssub.s32 1, %s4
  %s7 = scalar_select 0, %s6, %s4
  loop: start=0, step=1, limit=4
  $region2: #{residual_block_forward.1} parent=0 // loop_pre_header
    _
  $region3: #{residual_block_forward.1} parent=0 // loop_header
    %s9 = sphi 0, %s13
    %p10 = scmp.ge.s32.totalorder %s9, 4
    %s19 = sphi 0, %s21
    %s22 = sphi 0, %s19
    %s23 = sphi 0, %s22
    %s39 = sphi 0, %s23
    %s43 = sphi 0, %s43
    %s45 = sphi 0, %s43
    %s46 = sphi 0, %s45
    %s60 = sphi 0, %s46
    %s64 = sphi 0, %s64
    %s66 = sphi 0, %s64
    %s67 = sphi 0, %s66
    %s81 = sphi 0, %s67
    %s87 = sphi 0, %s89
    %s90 = sphi 0, %s87
    %s91 = sphi 0, %s90
    %s107 = sphi 0, %s91
  $region4: #{residual_block_forward.1} parent=0 // loop_header_branch
    %12 = sbr.rel (%p10) target = $region8
  $region5: #{residual_block_forward.1} parent=0 // loop_body
    %s14 = ssub.s32 %s9, 1
    %s15 = ssub.s32 %s9, 2
    %s16 = sadd.s32 %s9, 1
    %s17 = ssub.s32 %s9, %s16
    %p18 = scmp.eq.s32.totalorder %s17, 0
    %s20 = sadd.s32 %s19, 1
    %s21 = scalar_select %p18, %s19, %s20
    %p24 = pneg %p18
    %p25 = scmp.eq.s32.totalorder %s9, 1
    %p26 = por %p24, %p25
    %p27 = scmp.ne.s32.totalorder %s19, %s22
    %p28 = scmp.eq.s32.totalorder %s9, 0
    %p29 = por %p27, %p28
    %p30 = scmp.ne.s32.totalorder %s19, %s22
    %p31 = scmp.eq.s32.totalorder %s14, 1
    %p32 = por %p30, %p31
    %p33 = scmp.ne.s32.totalorder %s22, %s23
    %p34 = scmp.eq.s32.totalorder %s14, 0
    %p35 = por %p33, %p34
    %p36 = scmp.ne.s32.totalorder %s22, %s23
    %p37 = scmp.eq.s32.totalorder %s15, 1
    %p38 = por %p36, %p37
    %p40 = scmp.ne.s32.totalorder %s23, %s39
    %p41 = scmp.eq.s32.totalorder %s15, 0
    %p42 = por %p40, %p41
    %s44 = sadd.s32 %s43, 1
    %p47 = scmp.eq.s32.totalorder %s9, 1
    %p48 = scmp.ne.s32.totalorder %s43, %s45
    %p49 = scmp.eq.s32.totalorder %s9, 0
    %p50 = por %p48, %p49
    %p51 = scmp.ne.s32.totalorder %s43, %s45
    %p52 = scmp.eq.s32.totalorder %s14, 1
    %p53 = por %p51, %p52
    %p54 = scmp.ne.s32.totalorder %s45, %s46
    %p55 = scmp.eq.s32.totalorder %s14, 0
    %p56 = por %p54, %p55
    %p57 = scmp.ne.s32.totalorder %s45, %s46
    %p58 = scmp.eq.s32.totalorder %s15, 1
    %p59 = por %p57, %p58
    %p61 = scmp.ne.s32.totalorder %s46, %s60
    %p62 = scmp.eq.s32.totalorder %s15, 0
    %p63 = por %p61, %p62
    %s65 = sadd.s32 %s64, 1
    %p68 = scmp.eq.s32.totalorder %s9, 1
    %p69 = scmp.ne.s32.totalorder %s64, %s66
    %p70 = scmp.eq.s32.totalorder %s9, 0
    %p71 = por %p69, %p70
    %p72 = scmp.ne.s32.totalorder %s64, %s66
    %p73 = scmp.eq.s32.totalorder %s14, 1
    %p74 = por %p72, %p73
    %p75 = scmp.ne.s32.totalorder %s66, %s67
    %p76 = scmp.eq.s32.totalorder %s14, 0
    %p77 = por %p75, %p76
    %p78 = scmp.ne.s32.totalorder %s66, %s67
    %p79 = scmp.eq.s32.totalorder %s15, 1
    %p80 = por %p78, %p79
    %p82 = scmp.ne.s32.totalorder %s67, %s81
    %p83 = scmp.eq.s32.totalorder %s15, 0
    %p84 = por %p82, %p83
    %s85 = ssub.s32 %s9, %s16
    %p86 = scmp.eq.s32.totalorder %s85, 0
    %s88 = sadd.s32 %s87, 1
    %s89 = scalar_select %p86, %s87, %s88
    %p92 = pneg %p86
    %p93 = scmp.eq.s32.totalorder %s9, 1
    %p94 = por %p92, %p93
    %p95 = scmp.ne.s32.totalorder %s87, %s90
    %p96 = scmp.eq.s32.totalorder %s9, 0
    %p97 = por %p95, %p96
    %p98 = scmp.ne.s32.totalorder %s87, %s90
    %p99 = scmp.eq.s32.totalorder %s14, 1
    %p100 = por %p98, %p99
    %p101 = scmp.ne.s32.totalorder %s90, %s91
    %p102 = scmp.eq.s32.totalorder %s14, 0
    %p103 = por %p101, %p102
    %p104 = scmp.ne.s32.totalorder %s90, %s91
    %p105 = scmp.eq.s32.totalorder %s15, 1
    %p106 = por %p104, %p105
    %p108 = scmp.ne.s32.totalorder %s91, %s107
    %p109 = scmp.eq.s32.totalorder %s15, 0
    %p110 = por %p108, %p109
    %p111 = scmp.le.s32.totalorder 1, %s9
    %p112 = scmp.lt.s32.totalorder %s9, 3
    %p113 = pnand %p111, %p112
    %p114 = pneg %p113
    // Predicated region
    $region9: #{residual_block_forward.1} parent=5 // pred_check
      _
    $region10: #{residual_block_forward.1} parent=5 // pred_check_branch
      %116 = sbr.rel (%p113) target = $region12
    $region11: #{residual_block_forward.1} parent=5 // pred_region
      %s117 = ssub.s32 %s9, 1
      // Predicated region
      $region13: #{residual_block_forward.1} parent=11 // pred_check
        %p118 = pneg %p56
      $region14: #{residual_block_forward.1} parent=11 // pred_check_branch
        %120 = sbr.rel (%p118) target = $region16
      $region15: #{residual_block_forward.1} parent=11 // pred_region
        _
      $region16: #{residual_block_forward.1} parent=11 // pred_fallthru
        _
      // Predicated region
      $region17: #{residual_block_forward.1} parent=11 // pred_check
        %p121 = pneg %p77
      $region18: #{residual_block_forward.1} parent=11 // pred_check_branch
        %123 = sbr.rel (%p121) target = $region20
      $region19: #{residual_block_forward.1} parent=11 // pred_region
        _
      $region20: #{residual_block_forward.1} parent=11 // pred_fallthru
        _
    $region12: #{residual_block_forward.1} parent=5 // pred_fallthru
      _
    %p124 = scmp.lt.s32.totalorder %s9, 2
    // Predicated region
    $region21: #{residual_block_forward.1} parent=5 // pred_check
      %p125 = pneg %p124
    $region22: #{residual_block_forward.1} parent=5 // pred_check_branch
      %127 = sbr.rel (%p125) target = $region24
    $region23: #{residual_block_forward.1} parent=5 // pred_region
      // Predicated region
      $region25: #{residual_block_forward.1} parent=23 // pred_check
        %p128 = pneg %p29
      $region26: #{residual_block_forward.1} parent=23 // pred_check_branch
        %130 = sbr.rel (%p128) target = $region28
      $region27: #{residual_block_forward.1} parent=23 // pred_region
        %s131 = smul.u32 32, %s9
        %p132 = scmp.lt.s32.totalorder %s131, 63
        %s133 = scalar_select %p132, %s131, 63
        %s134 = smul.addr %s133, 2
        %s135 = smul.addr %s134, 4
        %s136 = scalar_lea.vmem %s0, %s135
        %s137 = smul.u32 32, %s9
      $region28: #{residual_block_forward.1} parent=23 // pred_fallthru
        _
    $region24: #{residual_block_forward.1} parent=5 // pred_fallthru
      _
    %p138 = scmp.le.s32.totalorder 1, %s9
    %p139 = scmp.lt.s32.totalorder %s9, 3
    %p140 = pnand %p138, %p139
    %p141 = pneg %p140
    // Predicated region
    $region29: #{residual_block_forward.1} parent=5 // pred_check
      _
    $region30: #{residual_block_forward.1} parent=5 // pred_check_branch
      %143 = sbr.rel (%p140) target = $region32
    $region31: #{residual_block_forward.1} parent=5 // pred_region
      %s144 = ssub.s32 %s9, 1
      %s145 = smul.u32 32, %s14
      %p146 = scmp.lt.s32.totalorder %s145, 63
      %s147 = scalar_select %p146, %s145, 63
      %s148 = smul.addr %s147, 2
      %s149 = smul.addr %s148, 4
      %s150 = scalar_lea.vmem %s0, %s149
      %p151 = pneg %p35
      %p152 = pneg %p32
      %p153 = pneg %p56
      %p154 = pneg %p53
      %p155 = pneg %p77
      %p156 = pneg %p74
      %p157 = pneg %p103
      %p158 = pneg %p100
      %s159 = smul.u32 32, %s14
      %p160 = scmp.lt.s32.totalorder %s159, 63
      %s161 = scalar_select %p160, %s159, 63
      %s162 = smul.addr %s161, 8
      %s163 = scalar_lea.vmem %s3, %s162
      %s164 = smul.u32 32, %s14
      %p165 = scmp.lt.s32.totalorder %s164, 63
      %s166 = scalar_select %p165, %s164, 63
      %s167 = smul.addr %s166, 2
      %s168 = smul.addr %s167, 4
      %s169 = scalar_lea.vmem %s0, %s168
      %s170 = smul.u32 32, %s14
      %s171 = smul.u32 32, %s14
      %p172 = scmp.lt.s32.totalorder %s171, 63
      %s173 = scalar_select %p172, %s171, 63
      %s174 = smul.addr %s173, 8
      %s175 = scalar_lea.vmem %s3, %s174
      %s176 = smul.u32 32, %s14
      %v178 = vld [vmem:[%s169] sm:$0xff]
      %v179 = vld [vmem:[%s169 + $0x8] sm:$0xff]
      %v180 = vld [vmem:[%s169 + $0x10] sm:$0xff]
      %v181 = vld [vmem:[%s169 + $0x18] sm:$0xff]
      %v182 = vld [vmem:[%s169 + $0x20] sm:$0xff]
      %v183 = vld [vmem:[%s169 + $0x28] sm:$0xff]
      %v184 = vld [vmem:[%s169 + $0x30] sm:$0xff]
      %v185 = vld [vmem:[%s169 + $0x38] sm:$0xff]
      %v186 = vld [vmem:[%s169 + $0x40] sm:$0xff]
      %v187 = vld [vmem:[%s169 + $0x48] sm:$0xff]
      %v188 = vld [vmem:[%s169 + $0x50] sm:$0xff]
      %v189 = vld [vmem:[%s169 + $0x58] sm:$0xff]
      %v190 = vld [vmem:[%s169 + $0x60] sm:$0xff]
      %v191 = vld [vmem:[%s169 + $0x68] sm:$0xff]
      %v192 = vld [vmem:[%s169 + $0x70] sm:$0xff]
      %v193 = vld [vmem:[%s169 + $0x78] sm:$0xff]
      %v194 = vld [vmem:[%s169 + $0x80] sm:$0xff]
      %v195 = vld [vmem:[%s169 + $0x88] sm:$0xff]
      %v196 = vld [vmem:[%s169 + $0x90] sm:$0xff]
      %v197 = vld [vmem:[%s169 + $0x98] sm:$0xff]
      %v198 = vld [vmem:[%s169 + $0xa0] sm:$0xff]
      %v199 = vld [vmem:[%s169 + $0xa8] sm:$0xff]
      %v200 = vld [vmem:[%s169 + $0xb0] sm:$0xff]
      %v201 = vld [vmem:[%s169 + $0xb8] sm:$0xff]
      %v202 = vld [vmem:[%s169 + $0xc0] sm:$0xff]
      %v203 = vld [vmem:[%s169 + $0xc8] sm:$0xff]
      %v204 = vld [vmem:[%s169 + $0xd0] sm:$0xff]
      %v205 = vld [vmem:[%s169 + $0xd8] sm:$0xff]
      %v206 = vld [vmem:[%s169 + $0xe0] sm:$0xff]
      %v207 = vld [vmem:[%s169 + $0xe8] sm:$0xff]
      %v208 = vld [vmem:[%s169 + $0xf0] sm:$0xff]
      %v209 = vld [vmem:[%s169 + $0xf8] sm:$0xff]
      %v210 = vld [vmem:[%s1] sm:$0xf]
      %v211 = vld [vmem:[%s1 + $0x4] sm:$0xf]
      %v212 = vld [vmem:[%s1 + $0x8] sm:$0xf]
      %v213 = vld [vmem:[%s1 + $0xc] sm:$0xf]
      %v214 = vld [vmem:[%s1 + $0x10] sm:$0xf]
      %v215 = vld [vmem:[%s1 + $0x14] sm:$0xf]
      %v216 = vld [vmem:[%s1 + $0x18] sm:$0xf]
      %v217 = vld [vmem:[%s1 + $0x1c] sm:$0xf]
      %v218 = vld [vmem:[%s1 + $0x20] sm:$0xf]
      %v219 = vld [vmem:[%s1 + $0x24] sm:$0xf]
      %v220 = vld [vmem:[%s1 + $0x28] sm:$0xf]
      %v221 = vld [vmem:[%s1 + $0x2c] sm:$0xf]
      %v222 = vld [vmem:[%s1 + $0x30] sm:$0xf]
      %v223 = vld [vmem:[%s1 + $0x34] sm:$0xf]
      %v224 = vld [vmem:[%s1 + $0x38] sm:$0xf]
      %v225 = vld [vmem:[%s1 + $0x3c] sm:$0xf]
      %v226 = vld [vmem:[%s1 + $0x40] sm:$0xf]
      %v227 = vld [vmem:[%s1 + $0x44] sm:$0xf]
      %v228 = vld [vmem:[%s2] sm:$0x1]
      %v230 = vlaneseq
      %v231 = vshrl.u32 %v230, 7
      %v232 = vsub.s32 0, %v231
      %v233 = vrot.slane %v228, %v232
      %v267 = vunpack.c.l.b16 %v178
      %v268 = vunpack.c.h.b16 %v178
      %v269 = vunpack.c.l.b16 %v179
      %v270 = vunpack.c.h.b16 %v179
      %v271 = vunpack.c.l.b16 %v180
      %v272 = vunpack.c.h.b16 %v180
      %v273 = vunpack.c.l.b16 %v181
      %v274 = vunpack.c.h.b16 %v181
      %v275 = vunpack.c.l.b16 %v182
      %v276 = vunpack.c.h.b16 %v182
      %v277 = vunpack.c.l.b16 %v183
      %v278 = vunpack.c.h.b16 %v183
      %v279 = vunpack.c.l.b16 %v184
      %v280 = vunpack.c.h.b16 %v184
      %v281 = vunpack.c.l.b16 %v185
      %v282 = vunpack.c.h.b16 %v185
      %v283 = vunpack.c.l.b16 %v186
      %v284 = vunpack.c.h.b16 %v186
      %v285 = vunpack.c.l.b16 %v187
      %v286 = vunpack.c.h.b16 %v187
      %v287 = vunpack.c.l.b16 %v188
      %v288 = vunpack.c.h.b16 %v188
      %v289 = vunpack.c.l.b16 %v189
      %v290 = vunpack.c.h.b16 %v189
      %v291 = vunpack.c.l.b16 %v190
      %v292 = vunpack.c.h.b16 %v190
      %v293 = vunpack.c.l.b16 %v191
      %v294 = vunpack.c.h.b16 %v191
      %v295 = vunpack.c.l.b16 %v192
      %v296 = vunpack.c.h.b16 %v192
      %v297 = vunpack.c.l.b16 %v193
      %v298 = vunpack.c.h.b16 %v193
      %v299 = vunpack.c.l.b16 %v194
      %v300 = vunpack.c.h.b16 %v194
      %v301 = vunpack.c.l.b16 %v195
      %v302 = vunpack.c.h.b16 %v195
      %v303 = vunpack.c.l.b16 %v196
      %v304 = vunpack.c.h.b16 %v196
      %v305 = vunpack.c.l.b16 %v197
      %v306 = vunpack.c.h.b16 %v197
      %v307 = vunpack.c.l.b16 %v198
      %v308 = vunpack.c.h.b16 %v198
      %v309 = vunpack.c.l.b16 %v199
      %v310 = vunpack.c.h.b16 %v199
      %v311 = vunpack.c.l.b16 %v200
      %v312 = vunpack.c.h.b16 %v200
      %v313 = vunpack.c.l.b16 %v201
      %v314 = vunpack.c.h.b16 %v201
      %v315 = vunpack.c.l.b16 %v202
      %v316 = vunpack.c.h.b16 %v202
      %v317 = vunpack.c.l.b16 %v203
      %v318 = vunpack.c.h.b16 %v203
      %v319 = vunpack.c.l.b16 %v204
      %v320 = vunpack.c.h.b16 %v204
      %v321 = vunpack.c.l.b16 %v205
      %v322 = vunpack.c.h.b16 %v205
      %v323 = vunpack.c.l.b16 %v206
      %v324 = vunpack.c.h.b16 %v206
      %v325 = vunpack.c.l.b16 %v207
      %v326 = vunpack.c.h.b16 %v207
      %v327 = vunpack.c.l.b16 %v208
      %v328 = vunpack.c.h.b16 %v208
      %v329 = vunpack.c.l.b16 %v209
      %v330 = vunpack.c.h.b16 %v209
      %v331 = vpack.c.b16 %v269, %v267
      %v332 = vpack.c.b16 %v270, %v268
      %v333 = vpack.c.b16 %v273, %v271
      %v334 = vpack.c.b16 %v274, %v272
      %v335 = vpack.c.b16 %v277, %v275
      %v336 = vpack.c.b16 %v278, %v276
      %v337 = vpack.c.b16 %v281, %v279
      %v338 = vpack.c.b16 %v282, %v280
      %v339 = vpack.c.b16 %v285, %v283
      %v340 = vpack.c.b16 %v286, %v284
      %v341 = vpack.c.b16 %v289, %v287
      %v342 = vpack.c.b16 %v290, %v288
      %v343 = vpack.c.b16 %v293, %v291
      %v344 = vpack.c.b16 %v294, %v292
      %v345 = vpack.c.b16 %v297, %v295
      %v346 = vpack.c.b16 %v298, %v296
      %v347 = vpack.c.b16 %v301, %v299
      %v348 = vpack.c.b16 %v302, %v300
      %v349 = vpack.c.b16 %v305, %v303
      %v350 = vpack.c.b16 %v306, %v304
      %v351 = vpack.c.b16 %v309, %v307
      %v352 = vpack.c.b16 %v310, %v308
      %v353 = vpack.c.b16 %v313, %v311
      %v354 = vpack.c.b16 %v314, %v312
      %v355 = vpack.c.b16 %v317, %v315
      %v356 = vpack.c.b16 %v318, %v316
      %v357 = vpack.c.b16 %v321, %v319
      %v358 = vpack.c.b16 %v322, %v320
      %v359 = vpack.c.b16 %v325, %v323
      %v360 = vpack.c.b16 %v326, %v324
      %v361 = vpack.c.b16 %v329, %v327
      %v362 = vpack.c.b16 %v330, %v328
      %v397 = vunpack.c.l.b16 %v210
      %v398 = vunpack.c.l.b16 %v211
      %v399 = vunpack.c.l.b16 %v212
      %v400 = vunpack.c.l.b16 %v213
      %v401 = vunpack.c.l.b16 %v214
      %v402 = vunpack.c.l.b16 %v215
      %v403 = vunpack.c.l.b16 %v216
      %v404 = vunpack.c.l.b16 %v217
      %v405 = vunpack.c.l.b16 %v218
      %v406 = vunpack.c.l.b16 %v219
      %v407 = vunpack.c.l.b16 %v220
      %v408 = vunpack.c.l.b16 %v221
      %v409 = vunpack.c.l.b16 %v222
      %v410 = vunpack.c.l.b16 %v223
      %v411 = vunpack.c.l.b16 %v224
      %v412 = vunpack.c.l.b16 %v225
      %v413 = vunpack.c.l.b16 %v226
      %v414 = vunpack.c.l.b16 %v227
      %v415 = vpack.c.b16 %v398, %v397
      %v416 = vpack.c.b16 %v400, %v399
      %v417 = vpack.c.b16 %v402, %v401
      %v418 = vpack.c.b16 %v404, %v403
      %v419 = vpack.c.b16 %v406, %v405
      %v420 = vpack.c.b16 %v408, %v407
      %v421 = vpack.c.b16 %v410, %v409
      %v422 = vpack.c.b16 %v412, %v411
      %v423 = vpack.c.b16 %v414, %v413
      %vm433 = vcmask 130048
      %v435 = vsel %vm433, %v332, 0
      %v438 = vsel %vm433, %v334, 0
      %v441 = vsel %vm433, %v336, 0
      %v444 = vsel %vm433, %v338, 0
      %v447 = vsel %vm433, %v340, 0
      %v450 = vsel %vm433, %v342, 0
      %v453 = vsel %vm433, %v344, 0
      %v456 = vsel %vm433, %v346, 0
      %v459 = vsel %vm433, %v348, 0
      %v462 = vsel %vm433, %v350, 0
      %v465 = vsel %vm433, %v352, 0
      %v468 = vsel %vm433, %v354, 0
      %v471 = vsel %vm433, %v356, 0
      %v474 = vsel %vm433, %v358, 0
      %v477 = vsel %vm433, %v360, 0
      %v480 = vsel %vm433, %v362, 0
      %482 = vmatprep.subr.bf16.mxu0 0
      %483 = vmatpush1.bf16.msra.mxu0 %v415
      %484 = vmatprep.subr.bf16.mxu0 0
      %485 = vmatpush1.bf16.msra.mxu0 %v416
      %486 = vmatprep.subr.bf16.mxu0 0
      %487 = vmatpush1.bf16.msra.mxu0 %v417
      %488 = vmatprep.subr.bf16.mxu0 0
      %489 = vmatpush1.bf16.msra.mxu0 %v418
      %490 = vmatprep.subr.bf16.mxu0 0
      %491 = vmatpush1.bf16.msra.mxu0 %v419
      %492 = vmatprep.subr.bf16.mxu0 0
      %493 = vmatpush1.bf16.msra.mxu0 %v420
      %494 = vmatprep.subr.bf16.mxu0 0
      %495 = vmatpush1.bf16.msra.mxu0 %v421
      %496 = vmatprep.subr.bf16.mxu0 0
      %497 = vmatpush1.bf16.msra.mxu0 %v422
      %498 = vmatprep.subr.bf16.mxu0 0
      %499 = vmatpush1.bf16.msra.mxu0 %v423
      %500 = vmatprep.subr.bf16.mxu0 0
      %501 = vmatpush1.bf16.msra.mxu0 0
      %502 = vmatprep.subr.bf16.mxu0 0
      %503 = vmatpush1.bf16.msra.mxu0 0
      %504 = vmatprep.subr.bf16.mxu0 0
      %505 = vmatpush1.bf16.msra.mxu0 0
      %506 = vmatprep.subr.bf16.mxu0 0
      %507 = vmatpush1.bf16.msra.mxu0 0
      %508 = vmatprep.subr.bf16.mxu0 0
      %509 = vmatpush1.bf16.msra.mxu0 0
      %510 = vmatprep.subr.bf16.mxu0 0
      %511 = vmatpush1.bf16.msra.mxu0 0
      %512 = vmatprep.subr.bf16.mxu0 0
      %513 = vmatpush1.bf16.msra.mxu0 0
      %514 = vmatprep.mubr.bf16.mxu0 %v435
      %515 = vmatmul.mubr.bf16.gmra.mrb[0].mxu0 %v331
      %v516 = vpop.f32.mrb[0].mxu0
      %v517 = vadd.f32 %v233, %v516
      %v518 = vpop.f32.mrb[0].mxu0
      %v519 = vpop.f32.mrb[0].mxu0
      %v520 = vadd.f32 %v233, %v519
      %v521 = vpop.f32.mrb[0].mxu0
      %522 = vmatprep.mubr.bf16.mxu0 %v438
      %523 = vmatmul.mubr.bf16.gmra.mrb[0].mxu0 %v333
      %v524 = vpop.f32.mrb[0].mxu0
      %v525 = vadd.f32 %v233, %v524
      %v526 = vpop.f32.mrb[0].mxu0
      %v527 = vpop.f32.mrb[0].mxu0
      %v528 = vadd.f32 %v233, %v527
      %v529 = vpop.f32.mrb[0].mxu0
      %530 = vmatprep.mubr.bf16.mxu0 %v441
      %531 = vmatmul.mubr.bf16.gmra.mrb[0].mxu0 %v335
      %v532 = vpop.f32.mrb[0].mxu0
      %v533 = vadd.f32 %v233, %v532
      %v534 = vpop.f32.mrb[0].mxu0
      %v535 = vpop.f32.mrb[0].mxu0
      %v536 = vadd.f32 %v233, %v535
      %v537 = vpop.f32.mrb[0].mxu0
      %538 = vmatprep.mubr.bf16.mxu0 %v444
      %539 = vmatmul.mubr.bf16.gmra.mrb[0].mxu0 %v337
      %v540 = vpop.f32.mrb[0].mxu0
      %v541 = vadd.f32 %v233, %v540
      %v542 = vpop.f32.mrb[0].mxu0
      %v543 = vpop.f32.mrb[0].mxu0
      %v544 = vadd.f32 %v233, %v543
      %v545 = vpop.f32.mrb[0].mxu0
      %546 = vmatprep.mubr.bf16.mxu0 %v447
      %547 = vmatmul.mubr.bf16.gmra.mrb[0].mxu0 %v339
      %v548 = vpop.f32.mrb[0].mxu0
      %v549 = vadd.f32 %v233, %v548
      %v550 = vpop.f32.mrb[0].mxu0
      %v551 = vpop.f32.mrb[0].mxu0
      %v552 = vadd.f32 %v233, %v551
      %v553 = vpop.f32.mrb[0].mxu0
      %554 = vmatprep.mubr.bf16.mxu0 %v450
      %555 = vmatmul.mubr.bf16.gmra.mrb[0].mxu0 %v341
      %v556 = vpop.f32.mrb[0].mxu0
      %v557 = vadd.f32 %v233, %v556
      %v558 = vpop.f32.mrb[0].mxu0
      %v559 = vpop.f32.mrb[0].mxu0
      %v560 = vadd.f32 %v233, %v559
      %v561 = vpop.f32.mrb[0].mxu0
      %562 = vmatprep.mubr.bf16.mxu0 %v453
      %563 = vmatmul.mubr.bf16.gmra.mrb[0].mxu0 %v343
      %v564 = vpop.f32.mrb[0].mxu0
      %v565 = vadd.f32 %v233, %v564
      %v566 = vpop.f32.mrb[0].mxu0
      %v567 = vpop.f32.mrb[0].mxu0
      %v568 = vadd.f32 %v233, %v567
      %v569 = vpop.f32.mrb[0].mxu0
      %570 = vmatprep.mubr.bf16.mxu0 %v456
      %571 = vmatmul.mubr.bf16.gmra.mrb[0].mxu0 %v345
      %v572 = vpop.f32.mrb[0].mxu0
      %v573 = vadd.f32 %v233, %v572
      %v574 = vpop.f32.mrb[0].mxu0
      %v575 = vpop.f32.mrb[0].mxu0
      %v576 = vadd.f32 %v233, %v575
      %v577 = vpop.f32.mrb[0].mxu0
      %578 = vmatprep.mubr.bf16.mxu0 %v459
      %579 = vmatmul.mubr.bf16.gmra.mrb[0].mxu0 %v347
      %v580 = vpop.f32.mrb[0].mxu0
      %v581 = vadd.f32 %v233, %v580
      %v582 = vpop.f32.mrb[0].mxu0
      %v583 = vpop.f32.mrb[0].mxu0
      %v584 = vadd.f32 %v233, %v583
      %v585 = vpop.f32.mrb[0].mxu0
      %586 = vmatprep.mubr.bf16.mxu0 %v462
      %587 = vmatmul.mubr.bf16.gmra.mrb[0].mxu0 %v349
      %v588 = vpop.f32.mrb[0].mxu0
      %v589 = vadd.f32 %v233, %v588
      %v590 = vpop.f32.mrb[0].mxu0
      %v591 = vpop.f32.mrb[0].mxu0
      %v592 = vadd.f32 %v233, %v591
      %v593 = vpop.f32.mrb[0].mxu0
      %594 = vmatprep.mubr.bf16.mxu0 %v465
      %595 = vmatmul.mubr.bf16.gmra.mrb[0].mxu0 %v351
      %v596 = vpop.f32.mrb[0].mxu0
      %v597 = vadd.f32 %v233, %v596
      %v598 = vpop.f32.mrb[0].mxu0
      %v599 = vpop.f32.mrb[0].mxu0
      %v600 = vadd.f32 %v233, %v599
      %v601 = vpop.f32.mrb[0].mxu0
      %602 = vmatprep.mubr.bf16.mxu0 %v468
      %603 = vmatmul.mubr.bf16.gmra.mrb[0].mxu0 %v353
      %v604 = vpop.f32.mrb[0].mxu0
      %v605 = vadd.f32 %v233, %v604
      %v606 = vpop.f32.mrb[0].mxu0
      %v607 = vpop.f32.mrb[0].mxu0
      %v608 = vadd.f32 %v233, %v607
      %v609 = vpop.f32.mrb[0].mxu0
      %610 = vmatprep.mubr.bf16.mxu0 %v471
      %611 = vmatmul.mubr.bf16.gmra.mrb[0].mxu0 %v355
      %v612 = vpop.f32.mrb[0].mxu0
      %v613 = vadd.f32 %v233, %v612
      %v614 = vpop.f32.mrb[0].mxu0
      %v615 = vpop.f32.mrb[0].mxu0
      %v616 = vadd.f32 %v233, %v615
      %v617 = vpop.f32.mrb[0].mxu0
      %618 = vmatprep.mubr.bf16.mxu0 %v474
      %619 = vmatmul.mubr.bf16.gmra.mrb[0].mxu0 %v357
      %v620 = vpop.f32.mrb[0].mxu0
      %v621 = vadd.f32 %v233, %v620
      %v622 = vpop.f32.mrb[0].mxu0
      %v623 = vpop.f32.mrb[0].mxu0
      %v624 = vadd.f32 %v233, %v623
      %v625 = vpop.f32.mrb[0].mxu0
      %626 = vmatprep.mubr.bf16.mxu0 %v477
      %627 = vmatmul.mubr.bf16.gmra.mrb[0].mxu0 %v359
      %v628 = vpop.f32.mrb[0].mxu0
      %v629 = vadd.f32 %v233, %v628
      %v630 = vpop.f32.mrb[0].mxu0
      %v631 = vpop.f32.mrb[0].mxu0
      %v632 = vadd.f32 %v233, %v631
      %v633 = vpop.f32.mrb[0].mxu0
      %634 = vmatprep.mubr.bf16.mxu0 %v480
      %635 = vmatmul.mubr.bf16.gmra.mrb[0].mxu0 %v361
      %v636 = vpop.f32.mrb[0].mxu0
      %v637 = vadd.f32 %v233, %v636
      %v638 = vpop.f32.mrb[0].mxu0
      %v639 = vpop.f32.mrb[0].mxu0
      %v640 = vadd.f32 %v233, %v639
      %v641 = vpop.f32.mrb[0].mxu0
      %642 = vdwg.mxu0
      %v643 = vmax.f32 %v517, 0.0
      %v644 = vmax.f32 %v520, 0.0
      %v645 = vmax.f32 %v525, 0.0
      %v646 = vmax.f32 %v528, 0.0
      %v647 = vmax.f32 %v533, 0.0
      %v648 = vmax.f32 %v536, 0.0
      %v649 = vmax.f32 %v541, 0.0
      %v650 = vmax.f32 %v544, 0.0
      %v651 = vmax.f32 %v549, 0.0
      %v652 = vmax.f32 %v552, 0.0
      %v653 = vmax.f32 %v557, 0.0
      %v654 = vmax.f32 %v560, 0.0
      %v655 = vmax.f32 %v565, 0.0
      %v656 = vmax.f32 %v568, 0.0
      %v657 = vmax.f32 %v573, 0.0
      %v658 = vmax.f32 %v576, 0.0
      %v659 = vmax.f32 %v581, 0.0
      %v660 = vmax.f32 %v584, 0.0
      %v661 = vmax.f32 %v589, 0.0
      %v662 = vmax.f32 %v592, 0.0
      %v663 = vmax.f32 %v597, 0.0
      %v664 = vmax.f32 %v600, 0.0
      %v665 = vmax.f32 %v605, 0.0
      %v666 = vmax.f32 %v608, 0.0
      %v667 = vmax.f32 %v613, 0.0
      %v668 = vmax.f32 %v616, 0.0
      %v669 = vmax.f32 %v621, 0.0
      %v670 = vmax.f32 %v624, 0.0
      %v671 = vmax.f32 %v629, 0.0
      %v672 = vmax.f32 %v632, 0.0
      %v673 = vmax.f32 %v637, 0.0
      %v674 = vmax.f32 %v640, 0.0
      %707 = vrot.lane.b32.xlu0 %v517, 112
      %v708 = vpop.permute.xlu0 %707
      %709 = vrot.lane.b32.xlu0 %v520, 112
      %v710 = vpop.permute.xlu0 %709
      %711 = vrot.lane.b32.xlu0 %v525, 112
      %v712 = vpop.permute.xlu0 %711
      %713 = vrot.lane.b32.xlu0 %v528, 112
      %v714 = vpop.permute.xlu0 %713
      %715 = vrot.lane.b32.xlu0 %v533, 112
      %v716 = vpop.permute.xlu0 %715
      %717 = vrot.lane.b32.xlu0 %v536, 112
      %v718 = vpop.permute.xlu0 %717
      %719 = vrot.lane.b32.xlu0 %v541, 112
      %v720 = vpop.permute.xlu0 %719
      %721 = vrot.lane.b32.xlu0 %v544, 112
      %v722 = vpop.permute.xlu0 %721
      %723 = vrot.lane.b32.xlu0 %v549, 112
      %v724 = vpop.permute.xlu0 %723
      %725 = vrot.lane.b32.xlu0 %v552, 112
      %v726 = vpop.permute.xlu0 %725
      %727 = vrot.lane.b32.xlu0 %v557, 112
      %v728 = vpop.permute.xlu0 %727
      %729 = vrot.lane.b32.xlu0 %v560, 112
      %v730 = vpop.permute.xlu0 %729
      %731 = vrot.lane.b32.xlu0 %v565, 112
      %v732 = vpop.permute.xlu0 %731
      %733 = vrot.lane.b32.xlu0 %v568, 112
      %v734 = vpop.permute.xlu0 %733
      %735 = vrot.lane.b32.xlu0 %v573, 112
      %v736 = vpop.permute.xlu0 %735
      %737 = vrot.lane.b32.xlu0 %v576, 112
      %v738 = vpop.permute.xlu0 %737
      %739 = vrot.lane.b32.xlu0 %v581, 112
      %v740 = vpop.permute.xlu0 %739
      %741 = vrot.lane.b32.xlu0 %v584, 112
      %v742 = vpop.permute.xlu0 %741
      %743 = vrot.lane.b32.xlu0 %v589, 112
      %v744 = vpop.permute.xlu0 %743
      %745 = vrot.lane.b32.xlu0 %v592, 112
      %v746 = vpop.permute.xlu0 %745
      %747 = vrot.lane.b32.xlu0 %v597, 112
      %v748 = vpop.permute.xlu0 %747
      %749 = vrot.lane.b32.xlu0 %v600, 112
      %v750 = vpop.permute.xlu0 %749
      %751 = vrot.lane.b32.xlu0 %v605, 112
      %v752 = vpop.permute.xlu0 %751
      %753 = vrot.lane.b32.xlu0 %v608, 112
      %v754 = vpop.permute.xlu0 %753
      %755 = vrot.lane.b32.xlu0 %v613, 112
      %v756 = vpop.permute.xlu0 %755
      %757 = vrot.lane.b32.xlu0 %v616, 112
      %v758 = vpop.permute.xlu0 %757
      %759 = vrot.lane.b32.xlu0 %v621, 112
      %v760 = vpop.permute.xlu0 %759
      %761 = vrot.lane.b32.xlu0 %v624, 112
      %v762 = vpop.permute.xlu0 %761
      %763 = vrot.lane.b32.xlu0 %v629, 112
      %v764 = vpop.permute.xlu0 %763
      %765 = vrot.lane.b32.xlu0 %v632, 112
      %v766 = vpop.permute.xlu0 %765
      %767 = vrot.lane.b32.xlu0 %v637, 112
      %v768 = vpop.permute.xlu0 %767
      %769 = vrot.lane.b32.xlu0 %v640, 112
      %v770 = vpop.permute.xlu0 %769
      %v803 = vadd.f32 %v643, %v708
      %v804 = vadd.f32 %v644, %v710
      %v805 = vadd.f32 %v645, %v712
      %v806 = vadd.f32 %v646, %v714
      %v807 = vadd.f32 %v647, %v716
      %v808 = vadd.f32 %v648, %v718
      %v809 = vadd.f32 %v649, %v720
      %v810 = vadd.f32 %v650, %v722
      %v811 = vadd.f32 %v651, %v724
      %v812 = vadd.f32 %v652, %v726
      %v813 = vadd.f32 %v653, %v728
      %v814 = vadd.f32 %v654, %v730
      %v815 = vadd.f32 %v655, %v732
      %v816 = vadd.f32 %v656, %v734
      %v817 = vadd.f32 %v657, %v736
      %v818 = vadd.f32 %v658, %v738
      %v819 = vadd.f32 %v659, %v740
      %v820 = vadd.f32 %v660, %v742
      %v821 = vadd.f32 %v661, %v744
      %v822 = vadd.f32 %v662, %v746
      %v823 = vadd.f32 %v663, %v748
      %v824 = vadd.f32 %v664, %v750
      %v825 = vadd.f32 %v665, %v752
      %v826 = vadd.f32 %v666, %v754
      %v827 = vadd.f32 %v667, %v756
      %v828 = vadd.f32 %v668, %v758
      %v829 = vadd.f32 %v669, %v760
      %v830 = vadd.f32 %v670, %v762
      %v831 = vadd.f32 %v671, %v764
      %v832 = vadd.f32 %v672, %v766
      %v833 = vadd.f32 %v673, %v768
      %v834 = vadd.f32 %v674, %v770
      %835 = vst.msk [vmem:[%s175] sm:$0xff] %vm433, %v803
      %836 = vst.msk [vmem:[%s175 + $0x8] sm:$0xff] %vm433, %v804
      %837 = vst.msk [vmem:[%s175 + $0x10] sm:$0xff] %vm433, %v805
      %838 = vst.msk [vmem:[%s175 + $0x18] sm:$0xff] %vm433, %v806
      %839 = vst.msk [vmem:[%s175 + $0x20] sm:$0xff] %vm433, %v807
      %840 = vst.msk [vmem:[%s175 + $0x28] sm:$0xff] %vm433, %v808
      %841 = vst.msk [vmem:[%s175 + $0x30] sm:$0xff] %vm433, %v809
      %842 = vst.msk [vmem:[%s175 + $0x38] sm:$0xff] %vm433, %v810
      %843 = vst.msk [vmem:[%s175 + $0x40] sm:$0xff] %vm433, %v811
      %844 = vst.msk [vmem:[%s175 + $0x48] sm:$0xff] %vm433, %v812
      %845 = vst.msk [vmem:[%s175 + $0x50] sm:$0xff] %vm433, %v813
      %846 = vst.msk [vmem:[%s175 + $0x58] sm:$0xff] %vm433, %v814
      %847 = vst.msk [vmem:[%s175 + $0x60] sm:$0xff] %vm433, %v815
      %848 = vst.msk [vmem:[%s175 + $0x68] sm:$0xff] %vm433, %v816
      %849 = vst.msk [vmem:[%s175 + $0x70] sm:$0xff] %vm433, %v817
      %850 = vst.msk [vmem:[%s175 + $0x78] sm:$0xff] %vm433, %v818
      %851 = vst.msk [vmem:[%s175 + $0x80] sm:$0xff] %vm433, %v819
      %852 = vst.msk [vmem:[%s175 + $0x88] sm:$0xff] %vm433, %v820
      %853 = vst.msk [vmem:[%s175 + $0x90] sm:$0xff] %vm433, %v821
      %854 = vst.msk [vmem:[%s175 + $0x98] sm:$0xff] %vm433, %v822
      %855 = vst.msk [vmem:[%s175 + $0xa0] sm:$0xff] %vm433, %v823
      %856 = vst.msk [vmem:[%s175 + $0xa8] sm:$0xff] %vm433, %v824
      %857 = vst.msk [vmem:[%s175 + $0xb0] sm:$0xff] %vm433, %v825
      %858 = vst.msk [vmem:[%s175 + $0xb8] sm:$0xff] %vm433, %v826
      %859 = vst.msk [vmem:[%s175 + $0xc0] sm:$0xff] %vm433, %v827
      %860 = vst.msk [vmem:[%s175 + $0xc8] sm:$0xff] %vm433, %v828
      %861 = vst.msk [vmem:[%s175 + $0xd0] sm:$0xff] %vm433, %v829
      %862 = vst.msk [vmem:[%s175 + $0xd8] sm:$0xff] %vm433, %v830
      %863 = vst.msk [vmem:[%s175 + $0xe0] sm:$0xff] %vm433, %v831
      %864 = vst.msk [vmem:[%s175 + $0xe8] sm:$0xff] %vm433, %v832
      %865 = vst.msk [vmem:[%s175 + $0xf0] sm:$0xff] %vm433, %v833
      %866 = vst.msk [vmem:[%s175 + $0xf8] sm:$0xff] %vm433, %v834
      %s867 = smul.u32 32, %s14
      %p868 = scmp.lt.s32.totalorder %s867, 63
      %s869 = scalar_select %p868, %s867, 63
      %s870 = smul.addr %s869, 8
      %s871 = scalar_lea.vmem %s3, %s870
      // Predicated region
      $region33: #{residual_block_forward.1} parent=31 // pred_check
        %p872 = pneg %p100
      $region34: #{residual_block_forward.1} parent=31 // pred_check_branch
        %874 = sbr.rel (%p872) target = $region36
      $region35: #{residual_block_forward.1} parent=31 // pred_region
        %s875 = smul.u32 32, %s14
      $region36: #{residual_block_forward.1} parent=31 // pred_fallthru
        _
    $region32: #{residual_block_forward.1} parent=5 // pred_fallthru
      _
    %p876 = scmp.le.s32.totalorder 2, %s9
    // Predicated region
    $region37: #{residual_block_forward.1} parent=5 // pred_check
      %p877 = pneg %p876
    $region38: #{residual_block_forward.1} parent=5 // pred_check_branch
      %879 = sbr.rel (%p877) target = $region40
    $region39: #{residual_block_forward.1} parent=5 // pred_region
      %s880 = ssub.s32 %s9, 2
      // Predicated region
      $region41: #{residual_block_forward.1} parent=39 // pred_check
        %p881 = pneg %p106
      $region42: #{residual_block_forward.1} parent=39 // pred_check_branch
        %883 = sbr.rel (%p881) target = $region44
      $region43: #{residual_block_forward.1} parent=39 // pred_region
        %s884 = smul.u32 32, %s15
        %p885 = scmp.lt.s32.totalorder %s884, 63
        %s886 = scalar_select %p885, %s884, 63
        %s887 = smul.addr %s886, 8
        %s888 = scalar_lea.vmem %s3, %s887
      $region44: #{residual_block_forward.1} parent=39 // pred_fallthru
        _
    $region40: #{residual_block_forward.1} parent=5 // pred_fallthru
      _
  $region6: #{residual_block_forward.1} parent=0 // loop_footer
    %s13 = sadd.s32 1, %s9
  $region7: #{residual_block_forward.1} parent=0 // loop_footer_branch
    %8 = sbr.rel target = $region3
  $region8: #{residual_block_forward.1} parent=0 // loop_exit
    _

</llo_original>
